<compile_context>
chip_gen: v5e
topology: v5e:2x2
jax: 0.10.0
libtpu: 0.0.40
codegen_flags: <defaults>
</compile_context>

<pallas_src>
import jax
import jax.numpy as jnp
from jax.experimental import pallas as pl
from jax.experimental.pallas import tpu as pltpu

_LANES = 128
_SUBLANE = {1: 32, 2: 16, 4: 8}          # itemsize -> sublane multiple
_VMEM_BUDGET_BYTES = 24 << 20            # total for all double-buffered streams
_COMPILER_PARAMS = pltpu.CompilerParams(
    dimension_semantics=("parallel",),   # independent row tiles -> 2 TCs on v7x
    vmem_limit_bytes=48 * 1024 * 1024,   # v5e scoped default is 16 MiB; raise it
)

# Hardware PRNG primitives only lower on real TPU (not the CPU interpret path).
_USE_TPU_PRNG = jax.default_backend() == "tpu"


# ----------------------------------------------------------------------------
# Kernels
# ----------------------------------------------------------------------------
def _uniforms(shape):
    """Two independent uniforms via the mantissa trick: u1 in (0,1], u2 in [0,1)."""
    exp_one = jnp.uint32(0x3F800000)
    b1 = pltpu.prng_random_bits(shape)
    b2 = pltpu.prng_random_bits(shape)
    if b1.dtype != jnp.uint32:           # older JAX returns int32 bits
        b1 = pltpu.bitcast(b1, jnp.uint32)
        b2 = pltpu.bitcast(b2, jnp.uint32)
    u1 = 2.0 - pltpu.bitcast((b1 >> 9) | exp_one, jnp.float32)   # (0, 1]
    u2 = pltpu.bitcast((b2 >> 9) | exp_one, jnp.float32) - 1.0   # [0, 1)
    return u1, u2


def _sampling_prng_kernel(seed_ref, zm_ref, zlv_ref, out_ref):
    # Seed with (user seed, tile id) as two separate words -> per-tile streams
    # without relying on "adjacent integer seeds are independent".
    pltpu.prng_seed(seed_ref[0], pl.program_id(0))

    shape = out_ref.shape
    two_pi = jnp.float32(2.0 * jnp.pi)

    if shape[0] % 2 == 0:
        # Box-Muller, using BOTH branches: draw bits for half the rows and emit
        # the cos half and the sin half -> half the PRNG draws and half the
        # log/sqrt/trig work per output element.
        half = (shape[0] // 2,) + shape[1:]
        u1, u2 = _uniforms(half)
        r = jnp.sqrt(-2.0 * jnp.log(u1))
        t = two_pi * u2
        eps = jnp.concatenate([r * jnp.cos(t), r * jnp.sin(t)], axis=0)
    else:
        # Odd block rows (tiny single-block case): plain Box-Muller.
        u1, u2 = _uniforms(shape)
        eps = jnp.sqrt(-2.0 * jnp.log(u1)) * jnp.cos(two_pi * u2)

    zm = zm_ref[...].astype(jnp.float32)
    zlv = zlv_ref[...].astype(jnp.float32)
    out_ref[...] = (zm + jnp.exp(0.5 * zlv) * eps).astype(out_ref.dtype)


def _sampling_eps_kernel(zm_ref, zlv_ref, eps_ref, out_ref):
    zm = zm_ref[...].astype(jnp.float32)
    zlv = zlv_ref[...].astype(jnp.float32)
    eps = eps_ref[...].astype(jnp.float32)
    out_ref[...] = (zm + jnp.exp(0.5 * zlv) * eps).astype(out_ref.dtype)


# ----------------------------------------------------------------------------
# Block-size selection
# ----------------------------------------------------------------------------
def _block_rows(rows, cols, dtype, block_rows, n_streams):
    itemsize = jnp.dtype(dtype).itemsize
    sub = _SUBLANE.get(itemsize, 8)          # 8 f32 / 16 bf16 / 32 int8-fp8

    if block_rows is not None:
        tb = max(1, min(int(block_rows), rows))
        if tb < rows:
            tb = max(sub, (tb // sub) * sub)
        return tb

    if rows <= sub:
        return rows                           # single full-extent block

    # ~24 MiB total across double-buffered streams -> ~4 MiB/block for 3 arrays.
    block_bytes = _VMEM_BUDGET_BYTES // (2 * n_streams)
    tb = max(sub, (block_bytes // max(1, cols * itemsize)) // sub * sub)

    # Guarantee >= 2 grid tiles so v7x's two TensorCores both get work on
    # mid-size shapes; neutral on v5e/v6e (single TC).
    half_up = ((pl.cdiv(rows, 2) + sub - 1) // sub) * sub
    return min(tb, half_up, rows)


# ----------------------------------------------------------------------------
# pallas_call wrappers (lane-dense 2-D inputs)
# ----------------------------------------------------------------------------
def _sampling_train_prng(zm, zlv, seed, block_rows=None):
    rows, cols = zm.shape
    tb = _block_rows(rows, cols, zm.dtype, block_rows, n_streams=3)
    grid = (pl.cdiv(rows, tb),)
    spec = pl.BlockSpec((tb, cols), lambda i, seed_ref: (i, 0))
    return pl.pallas_call(
        _sampling_prng_kernel,
        out_shape=jax.ShapeDtypeStruct((rows, cols), zm.dtype),
        grid_spec=pltpu.PrefetchScalarGridSpec(
            num_scalar_prefetch=1,
            grid=grid,
            in_specs=[spec, spec],
            out_specs=spec,
        ),
        compiler_params=_COMPILER_PARAMS,
    )(seed, zm, zlv)


def _sampling_train_eps(zm, zlv, eps, block_rows=None):
    rows, cols = zm.shape
    tb = _block_rows(rows, cols, zm.dtype, block_rows, n_streams=4)
    grid = (pl.cdiv(rows, tb),)
    spec = pl.BlockSpec((tb, cols), lambda i: (i, 0))
    eps_spec = pl.BlockSpec((tb, cols), lambda i: (i, 0))
    return pl.pallas_call(
        _sampling_eps_kernel,
        out_shape=jax.ShapeDtypeStruct((rows, cols), zm.dtype),
        grid=grid,
        in_specs=[spec, spec, eps_spec],
        out_specs=spec,
        compiler_params=_COMPILER_PARAMS,
    )(zm, zlv, eps)


# ----------------------------------------------------------------------------
# Public entry point (mirrors Sampling.forward)
# ----------------------------------------------------------------------------
def sampling(z_mean, z_log_var, *, training=False, key=None, block_rows=None):
    """Pallas equivalent of Sampling.forward(z_mean, z_log_var, training)."""
    assert z_mean.shape == z_log_var.shape and z_mean.ndim == 2

    if not training:
        # epsilon == 0  =>  output is exactly z_mean; skip the kernel entirely.
        return z_mean

    if key is None:
        raise ValueError("training=True requires a PRNG key")

    batch, dim = z_mean.shape
    n = batch * dim

    # Present a lane-dense 2-D slab to the kernel (last dim a multiple of 128).
    if dim % _LANES == 0:
        zm2, zlv2 = z_mean, z_log_var
        needs_unpack = False
    else:
        pad = (-n) % _LANES
        rows = (n + pad) // _LANES
        zm_flat = z_mean.reshape(-1)
        zlv_flat = z_log_var.reshape(-1)
        if pad:
            zm_flat = jnp.pad(zm_flat, (0, pad))
            zlv_flat = jnp.pad(zlv_flat, (0, pad))
        zm2 = zm_flat.reshape(rows, _LANES)
        zlv2 = zlv_flat.reshape(rows, _LANES)
        needs_unpack = True

    if _USE_TPU_PRNG:
        # TODO(synk): TPU hardware PRNG stream, not bit-exact with torch.normal;
        # distribution is the same N(0, 1).
        seed = jax.random.randint(key, (1,), 0, jnp.iinfo(jnp.int32).max,
                                  dtype=jnp.int32)
        out2 = _sampling_train_prng(zm2, zlv2, seed, block_rows=block_rows)
    else:
        # Portable fallback (prng_seed has no lowering off-TPU): draw epsilon
        # outside the kernel and stream it in.
        eps2 = jax.random.normal(key, zm2.shape, dtype=jnp.float32)
        out2 = _sampling_train_eps(zm2, zlv2, eps2, block_rows=block_rows)

    if not needs_unpack:
        return out2
    return out2.reshape(-1)[:n].reshape(batch, dim)


# ----------------------------------------------------------------------------
# Self-test
# ----------------------------------------------------------------------------
if __name__ == "__main__":
    root = jax.random.PRNGKey(0)
    k_mean, k_logvar, k_eps, k_eps_big = jax.random.split(root, 4)

    # --- small demo shape matching the PyTorch module's (batch, latent_dim) ---
    batch, dim = 2, 32
    z_mean = jax.random.normal(k_mean, (batch, dim), dtype=jnp.float32)
    z_log_var = jax.random.normal(k_logvar, (batch, dim), dtype=jnp.float32)

    # eval mode: epsilon == 0  =>  out == z_mean (kernel bypassed)
    out_eval = sampling(z_mean, z_log_var, training=False)
    jax.block_until_ready(out_eval)
    assert jnp.array_equal(out_eval, z_mean), "eval-mode mismatch"

    # training mode at the small shape (exercises the pad-to-128-lanes path)
    out_train = sampling(z_mean, z_log_var, training=True, key=k_eps)
    jax.block_until_ready(out_train)
    assert out_train.shape == (batch, dim)
    assert bool(jnp.all(jnp.isfinite(out_train))), "non-finite training output"
    eps_rec = (out_train - z_mean) / jnp.exp(0.5 * z_log_var)
    assert bool(jnp.all(jnp.abs(eps_rec) < 8.0)), "recovered epsilon out of range"

    # training mode at a lane-dense shape with several grid tiles: check the
    # epsilon is ~N(0,1) and that different tiles draw different noise.
    B2, D2 = 1024, 128
    zm_big = jnp.zeros((B2, D2), jnp.float32)
    zlv_big = jnp.zeros((B2, D2), jnp.float32)          # => output == epsilon
    eps_big = sampling(zm_big, zlv_big, training=True, key=k_eps_big,
                       block_rows=256)                  # 4 grid tiles
    jax.block_until_ready(eps_big)
    mean = float(jnp.mean(eps_big))
    std = float(jnp.std(eps_big))
    assert abs(mean) < 0.05, f"epsilon mean off: {mean}"
    assert abs(std - 1.0) < 0.05, f"epsilon std off: {std}"
    assert not bool(jnp.all(eps_big[:256] == eps_big[256:512])), \
        "grid tiles produced identical noise"

    print("KERNEL_OK")
</pallas_src>

<mosaic_0001>
module attributes {stable_mosaic.version = 11 : i64} {
  func.func @_sampling_eps_kernel(%arg0: i32, %arg1: memref<1x128xf32, #tpu.memory_space<vmem>>, %arg2: memref<1x128xf32, #tpu.memory_space<vmem>>, %arg3: memref<1x128xf32, #tpu.memory_space<vmem>>, %arg4: memref<1x128xf32, #tpu.memory_space<vmem>>) attributes {dimension_semantics = [#tpu.dimension_semantics<parallel>], iteration_bounds = array<i64: 1>, scalar_prefetch = 0 : i64, scratch_operands = 0 : i64, tpu.core_type = #tpu.core_type<tc>, window_params = [{transform_indices = @transform_0, window_bounds = array<i64: 1, 128>}, {transform_indices = @transform_1, window_bounds = array<i64: 1, 128>}, {transform_indices = @transform_2, window_bounds = array<i64: 1, 128>}, {transform_indices = @transform_3, window_bounds = array<i64: 1, 128>}]} {
    %c0 = arith.constant 0 : index
    %c0_0 = arith.constant 0 : index
    %0 = vector.load %arg1[%c0, %c0_0] : memref<1x128xf32, #tpu.memory_space<vmem>>, vector<1x128xf32>
    %c0_1 = arith.constant 0 : index
    %c0_2 = arith.constant 0 : index
    %1 = vector.load %arg2[%c0_1, %c0_2] : memref<1x128xf32, #tpu.memory_space<vmem>>, vector<1x128xf32>
    %c0_3 = arith.constant 0 : index
    %c0_4 = arith.constant 0 : index
    %2 = vector.load %arg3[%c0_3, %c0_4] : memref<1x128xf32, #tpu.memory_space<vmem>>, vector<1x128xf32>
    %cst = arith.constant 5.000000e-01 : f32
    %3 = vector.broadcast %cst : f32 to vector<1x128xf32>
    %4 = arith.mulf %3, %1 : vector<1x128xf32>
    %5 = math.exp %4 : vector<1x128xf32>
    %6 = arith.mulf %5, %2 : vector<1x128xf32>
    %7 = arith.addf %0, %6 : vector<1x128xf32>
    %c0_5 = arith.constant 0 : index
    %c0_6 = arith.constant 0 : index
    %8 = vector.load %arg4[%c0_5, %c0_6] : memref<1x128xf32, #tpu.memory_space<vmem>>, vector<1x128xf32>
    tpu.vector_store %arg4[%c0_5, %c0_6], %7 {strides = array<i32>} : memref<1x128xf32, #tpu.memory_space<vmem>>, vector<1x128xf32>,
    return
  }
  func.func @transform_0(%arg0: i32) -> (i32, i32) {
    %c0_i32 = arith.constant 0 : i32
    %c0_i32_0 = arith.constant 0 : i32
    return %arg0, %c0_i32 : i32, i32
  }
  func.func @transform_1(%arg0: i32) -> (i32, i32) {
    %c0_i32 = arith.constant 0 : i32
    %c0_i32_0 = arith.constant 0 : i32
    return %arg0, %c0_i32 : i32, i32
  }
  func.func @transform_2(%arg0: i32) -> (i32, i32) {
    %c0_i32 = arith.constant 0 : i32
    %c0_i32_0 = arith.constant 0 : i32
    return %arg0, %c0_i32 : i32, i32
  }
  func.func @transform_3(%arg0: i32) -> (i32, i32) {
    %c0_i32 = arith.constant 0 : i32
    %c0_i32_0 = arith.constant 0 : i32
    return %arg0, %c0_i32 : i32, i32
  }
}

</mosaic_0001>

<llo_original>
// kernel: tpu_custom_call.1
$region0: #{tpu_custom_call.1}
  #allocation0 [shape = 'u32[]', space=smem, size = 0x4, offset = 0x4, fixed_abs, tag = 'smem constant byte address 0x4 - core index']
  #allocation1 [shape = 'u32[72,128]{1,0:T(1,128)}', space=vmem, size = 0x9000, scoped, tag = 'internal scratch']
  %s0 = inlined_call_operand.hbm [shape: f32[1,128], index: 0, kind: input, shape index: {}]
  %s1 = inlined_call_operand.hbm [shape: f32[1,128], index: 1, kind: input, shape index: {}]
  %s2 = inlined_call_operand.vmem [shape: f32[1,128], index: 2, kind: input, shape index: {}]
  %s3 = inlined_call_operand.hbm [shape: f32[1,128], index: 3, kind: output, shape index: {}]
  %s4 = sld [smem:[#allocation0]]
  $region30: #{tpu_custom_call.1} parent=0
    _
  %s6 = ssub.s32 1, %s4
  %s7 = scalar_select 0, %s6, %s4
  $region1: #{tpu_custom_call.1} parent=0
    #allocation2 [shape = 'u8[512]{0}', space=vmem, size = 0x400, scoped, tag = 'input window, operand 0, single buffered']
    #allocation3 [shape = 's32[1]{0}', space=sflag, size = 0x4, scoped, tag = 'scoped memory for tpu_custom_call.1']
    #allocation4 [shape = 's32[1]{0}', space=sflag, size = 0x4, scoped, tag = 'scoped memory for tpu_custom_call.1']
    #allocation5 [shape = 'u8[512]{0}', space=vmem, size = 0x400, scoped, tag = 'input window, operand 1, single buffered']
    #allocation6 [shape = 's32[1]{0}', space=sflag, size = 0x4, scoped, tag = 'scoped memory for tpu_custom_call.1']
    #allocation7 [shape = 'u8[512]{0}', space=vmem, size = 0x400, scoped, tag = 'output window, operand 0, single buffered']
    %8 = vsyncpa [#allocation3], 0
    %9 = vsyncpa [#allocation6], 0
    %10 = vsyncpa [#allocation4], 0
    // Predicated region
    $region2: #{tpu_custom_call.1} parent=1 // pred_check
      _
    $region3: #{tpu_custom_call.1} parent=1 // pred_check_branch
      %12 = sbr.rel (0) target = $region5
    $region4: #{tpu_custom_call.1} parent=1 // pred_region
      %14 = vsyncadd [#allocation3], 0
      %s16 = sshll.u32 %s0, 4
      %s17 = int_to_ptr.hbm [resolvable:$true] %s16
      %s18 = sshll.u32 [#allocation2], 4
      %s19 = int_to_ptr.vmem [resolvable:$true] %s18
      %21 = dma.hbm_to_vmem [thread:$0]  %s17, 16, %s19, [#allocation3]
    $region5: #{tpu_custom_call.1} parent=1 // pred_fallthru
      _
    // Predicated region
    $region6: #{tpu_custom_call.1} parent=1 // pred_check
      _
    $region7: #{tpu_custom_call.1} parent=1 // pred_check_branch
      %23 = sbr.rel (0) target = $region9
    $region8: #{tpu_custom_call.1} parent=1 // pred_region
      %25 = vsyncadd [#allocation6], 0
      %s27 = sshll.u32 %s1, 4
      %s28 = int_to_ptr.hbm [resolvable:$true] %s27
      %s29 = sshll.u32 [#allocation5], 4
      %s30 = int_to_ptr.vmem [resolvable:$true] %s29
      %32 = dma.hbm_to_vmem [thread:$0]  %s28, 16, %s30, [#allocation6]
    $region9: #{tpu_custom_call.1} parent=1 // pred_fallthru
      _
    // Predicated region
    $region10: #{tpu_custom_call.1} parent=1 // pred_check
      _
    $region11: #{tpu_custom_call.1} parent=1 // pred_check_branch
      %34 = sbr.rel (0) target = $region13
    $region12: #{tpu_custom_call.1} parent=1 // pred_region
      _
    $region13: #{tpu_custom_call.1} parent=1 // pred_fallthru
      _
    // Predicated region
    $region14: #{tpu_custom_call.1} parent=1 // pred_check
      _
    $region15: #{tpu_custom_call.1} parent=1 // pred_check_branch
      %36 = sbr.rel (0) target = $region17
    $region16: #{tpu_custom_call.1} parent=1 // pred_region
      %38 = dma.done [#allocation3], 16
    $region17: #{tpu_custom_call.1} parent=1 // pred_fallthru
      _
    // Predicated region
    $region18: #{tpu_custom_call.1} parent=1 // pred_check
      _
    $region19: #{tpu_custom_call.1} parent=1 // pred_check_branch
      %40 = sbr.rel (0) target = $region21
    $region20: #{tpu_custom_call.1} parent=1 // pred_region
      %42 = dma.done [#allocation6], 16
    $region21: #{tpu_custom_call.1} parent=1 // pred_fallthru
      _
    %v43 = vld [vmem:[#allocation2] sm:$0x1]
    %v44 = vld [vmem:[#allocation5] sm:$0x1]
    %v45 = vld [vmem:[%s2] sm:$0x1]
    %v46 = vmul.f32 %v44, 0.5
    %v47 = vmul.f32 %v46, 1.442695
    %v48 = vpow.pop %v47
    %v49 = vmul.f32 %v48, %v45
    %v50 = vadd.f32 %v43, %v49
    %51 = vst [vmem:[#allocation7] sm:$0x1] %v50
    // Predicated region
    $region22: #{tpu_custom_call.1} parent=1 // pred_check
      _
    $region23: #{tpu_custom_call.1} parent=1 // pred_check_branch
      %53 = sbr.rel (0) target = $region25
    $region24: #{tpu_custom_call.1} parent=1 // pred_region
      %55 = vsyncadd [#allocation4], 0
      %s57 = sshll.u32 [#allocation7], 4
      %s58 = int_to_ptr.vmem [resolvable:$true] %s57
      %s59 = sshll.u32 %s3, 4
      %s60 = int_to_ptr.hbm [resolvable:$true] %s59
      %62 = dma.vmem_to_hbm [thread:$0]  %s58, 16, %s60, [#allocation4]
    $region25: #{tpu_custom_call.1} parent=1 // pred_fallthru
      _
    // Predicated region
    $region26: #{tpu_custom_call.1} parent=1 // pred_check
      _
    $region27: #{tpu_custom_call.1} parent=1 // pred_check_branch
      %64 = sbr.rel (0) target = $region29
    $region28: #{tpu_custom_call.1} parent=1 // pred_region
      %66 = dma.done [#allocation4], 16
    $region29: #{tpu_custom_call.1} parent=1 // pred_fallthru
      _
    %67 = vsyncpa [#allocation3], 1
    %68 = vsyncpa [#allocation6], 1
    %69 = vsyncpa [#allocation4], 1

</llo_original>
